<compile_context>
chip_gen: v7x
topology: tpu7x:2x2x1
jax: 0.10.0
libtpu: 0.0.40
codegen_flags: <defaults>
</compile_context>

<pallas_src>
import functools
import math

import jax
import jax.numpy as jnp
from jax.experimental import pallas as pl
from jax.experimental.pallas import tpu as pltpu


def _rup(a, b):
    return (a + b - 1) // b * b


# ----------------------------- in-kernel helpers -----------------------------

def _atan_f32(x):
    """float32-accurate arctan (Cephes atanf) using one approx reciprocal."""
    pio2 = 1.5707963267948966
    pio4 = 0.7853981633974483
    tan3pio8 = 2.414213562373095
    tanpio8 = 0.4142135623730951

    sgn = jnp.where(x < 0.0, -1.0, 1.0)
    ax = jnp.abs(x)
    big = ax > tan3pio8
    mid = jnp.logical_and(ax > tanpio8, jnp.logical_not(big))

    y0 = jnp.where(big, pio2, jnp.where(mid, pio4, 0.0))
    # Select numerator/denominator BEFORE the single reciprocal.  Denominators:
    #   big -> ax > 2.414 ; mid -> ax + 1 > 1.414 ; small -> 1.0.
    num = jnp.where(big, -1.0, jnp.where(mid, ax - 1.0, ax))
    den = jnp.where(big, ax, jnp.where(mid, ax + 1.0, 1.0))
    xr = num * pl.reciprocal(den, approx=True)
    z = xr * xr
    p = ((8.05374449538e-2 * z - 1.38776856032e-1) * z
         + 1.99777106478e-1) * z - 3.33329491539e-1
    return sgn * (y0 + (p * z * xr + xr))


def _conv2d_d_kernel(x_ref, w_ref, b_ref, out_ref, col_ref, *,
                     kh, kw, c, o_ch, wpe, lp, s, dh, dw):
    # x_ref  : (C, L_tile)        flat padded input tile (compute dtype)
    # w_ref  : (2*O, KH*KW*C)     fused [cos(W); sin(W)], k = (ki*KW+kj)*C + c
    # b_ref  : (O, 1)             bias (f32)
    # out_ref: (2*O, Lp)          rows 0..O-1 = out, rows O..2O-1 = theta/pi
    # col_ref: (KH*KW*C, Lp)      VMEM im2col scratch (compute dtype)

    # --- build the im2col scratch: one lane slice per tap (stride s if s>1) ---
    for ki in range(kh):
        for kj in range(kw):
            base = ki * dh * wpe + kj * dw
            sl = pl.ds(base, lp) if s == 1 else pl.ds(base, lp, stride=s)
            col_ref[pl.ds((ki * kw + kj) * c, c), :] = x_ref[:, sl]

    # --- one deep MXU contraction: (2O, K) x (K, Lp) -> (2O, Lp), f32 acc ---
    acc = jnp.dot(w_ref[...], col_ref[...], preferred_element_type=jnp.float32)
    out_cos = acc[:o_ch, :]
    out_sin = acc[o_ch:, :]

    # --- epilogue (lane-dense, f32) ---
    eps = 1e-5
    a_gt = out_cos > 0.0
    b_gt = out_sin > 0.0
    ab_eq = a_gt == b_gt
    sa = jnp.where(a_gt, 1.0, -1.0)
    sb = jnp.where(b_gt, 1.0, -1.0)
    e = sa * sb                              # +1 where ab_eq, -1 otherwise

    # theta0 = ab_eq ?  atan(sin/(cos+eps)) : -atan(cos/(sin+eps))
    #        = atan(e * num / den)   (atan is odd, e = +-1)
    num = jnp.where(ab_eq, out_sin, out_cos)
    den = jnp.where(ab_eq, out_cos, out_sin) + eps
    rr = e * num * pl.reciprocal(den, approx=True)
    theta0 = _atan_f32(rr)

    # sin/cos(theta0) via sin(atan r) = r/sqrt(1+r^2), cos = 1/sqrt(1+r^2).
    inv_hyp = jax.lax.rsqrt(1.0 + rr * rr)
    sin0 = rr * inv_hyp
    cos0 = inv_hyp

    # peak / sin(peak) / cos(peak) from sign arithmetic (no nested selects):
    #   ab_eq & a_gt: pi/2 ; ab_eq & !a_gt: -pi/2 ; !ab_eq & b_gt: 0 ; else -pi
    sp = 0.5 * (sa + sb)                     # sin(peak)
    cp = 0.5 * (sb - sa)                     # cos(peak)
    peak = (math.pi / 2.0) * sb + (math.pi / 4.0) * (e - 1.0)

    sin_t = sp * cos0 - cp * sin0            # sin(peak - theta0)
    cos_t = cp * cos0 + sp * sin0            # cos(peak - theta0)

    out_ref[pl.ds(0, o_ch), :] = sin_t * out_cos + cos_t * out_sin + b_ref[...]
    out_ref[pl.ds(o_ch, o_ch), :] = (peak - theta0) * (1.0 / math.pi)


# ------------------------------- host wrapper -------------------------------

def conv2d_d_forward(x, weight, bias, kernel_size,
                     stride=(1, 1), padding=(0, 0), dilation=(1, 1),
                     compute_dtype=jnp.bfloat16):
    """Conv2dD forward. x: (N,C,H,W) f32, weight: (O, C*KH*KW), bias: (O,)."""
    N, C, H, W = x.shape
    KH, KW = kernel_size
    sh, sw = stride
    ph, pw = padding
    dh, dw = dilation
    O = weight.shape[0]
    assert weight.shape[1] == C * KH * KW, "groups != 1 not supported"
    if sh != sw:
        # TODO(synk): flat-window addressing assumes a square stride.
        raise NotImplementedError("stride_h != stride_w not supported")
    s = sh

    OH = (H + 2 * ph - dh * (KH - 1) - 1) // sh + 1
    OW = (W + 2 * pw - dw * (KW - 1) - 1) // sw + 1
    Wpe = W + 2 * pw                        # padded row width = flat row pitch
    KC = KH * KW * C
    itm = jnp.dtype(compute_dtype).itemsize
    sub_c = 8 * (4 // itm)                  # sublane group of compute dtype

    # Per-chip VMEM budget (~51 MiB on v7x, ~102 MiB on v5e/v6e).
    try:
        phys = int(getattr(pltpu.get_tpu_info(), "vmem_capacity_bytes",
                           64 << 20))
    except Exception:
        phys = 64 << 20
    cap = min(int(phys * 0.8), 112 << 20)

    def footprint(toh):
        lp = toh * Wpe
        l_tile = _rup(s * (lp - 1) + (KH - 1) * dh * Wpe + (KW - 1) * dw + 1,
                      128)
        in_blk = _rup(C, sub_c) * l_tile * itm
        w_blk = _rup(2 * O, sub_c) * _rup(KC, 128) * itm
        b_blk = _rup(O, 8) * 128 * 4
        out_blk = _rup(2 * O, 8) * _rup(lp, 128) * 4
        col = _rup(KC, sub_c) * _rup(lp, 128) * itm
        return 2 * (in_blk + w_blk + b_blk + out_blk) + col, l_tile, lp

    # Pick the OH-tile so the (lane-padding aware) footprint fits the budget.
    TOH = max(1, min(OH, 4096 // max(Wpe, 1)))
    need, L_tile, Lp = footprint(TOH)
    budget = cap - (4 << 20)
    while need > budget and TOH > 1:
        TOH = (TOH + 1) // 2
        need, L_tile, Lp = footprint(TOH)
    T = -(-OH // TOH)
    TOH = -(-OH // T)                       # rebalance tiles (never grows)
    need, L_tile, Lp = footprint(TOH)

    # --- pad NCHW, flatten spatial, halo-replicate tiles (no transpose) ---
    tile_stride = TOH * s * Wpe
    total_flat = (T - 1) * tile_stride + L_tile
    Hp_needed = -(-total_flat // Wpe)
    bottom_pad = max(ph, Hp_needed - H - ph)
    Hp_total = H + ph + bottom_pad
    xp = jnp.pad(x, ((0, 0), (0, 0), (ph, bottom_pad), (pw, pw)))
    xp = xp.astype(compute_dtype)
    xflat = xp.reshape(N, C, Hp_total * Wpe)
    if T == 1:
        x_tiles = xflat[:, None, :, :L_tile]
    else:
        x_tiles = jnp.stack(
            [xflat[:, :, t * tile_stride: t * tile_stride + L_tile]
             for t in range(T)], axis=1)            # (N, T, C, L_tile)

    # Fused weight: row o in [0,O) = cos(W), row O+o = sin(W);
    # column k = (ki*KW + kj)*C + c  (matches the in-kernel scratch layout).
    w4 = weight.reshape(O, C, KH, KW)
    wf = jnp.concatenate([jnp.cos(w4), jnp.sin(w4)], axis=0)   # (2O, C, KH, KW)
    wf = jnp.transpose(wf, (0, 2, 3, 1)).reshape(2 * O, KC).astype(compute_dtype)
    b2 = bias.reshape(O, 1).astype(jnp.float32)

    kernel = functools.partial(
        _conv2d_d_kernel, kh=KH, kw=KW, c=C, o_ch=O,
        wpe=Wpe, lp=Lp, s=s, dh=dh, dw=dw)

    grid_spec = pltpu.PrefetchScalarGridSpec(
        num_scalar_prefetch=0,
        grid=(N, T),
        in_specs=[
            pl.BlockSpec((None, None, C, L_tile), lambda n, t: (n, t, 0, 0)),
            pl.BlockSpec((2 * O, KC), lambda n, t: (0, 0)),
            pl.BlockSpec((O, 1), lambda n, t: (0, 0)),
        ],
        out_specs=pl.BlockSpec((None, 2 * O, Lp), lambda n, t: (n, 0, t)),
        scratch_shapes=[pltpu.VMEM((KC, Lp), compute_dtype)],
    )

    out = pl.pallas_call(
        kernel,
        out_shape=jax.ShapeDtypeStruct((N, 2 * O, T * Lp), jnp.float32),
        grid_spec=grid_spec,
        compiler_params=pltpu.CompilerParams(
            dimension_semantics=("parallel", "parallel"),
            vmem_limit_bytes=int(min(cap, max(32 << 20, need + (8 << 20))))),
    )(x_tiles, wf, b2)

    # Free reshape (flat layout already matches (oh, w) row pitch), then slice
    # off the padded/garbage rows and columns.
    out = out.reshape(N, 2 * O, T * TOH, Wpe)[:, :, :OH, :OW]
    return out


# --------------------------- pure-JAX reference check ---------------------------

def _unfold_nchw(x, ks, stride, padding, dilation):
    """Equivalent of torch.nn.functional.unfold for NCHW input."""
    N, C, H, W = x.shape
    kh, kw = ks
    sh, sw = stride
    ph, pw = padding
    dh, dw = dilation
    oh = (H + 2 * ph - dh * (kh - 1) - 1) // sh + 1
    ow = (W + 2 * pw - dw * (kw - 1) - 1) // sw + 1
    xp = jnp.pad(x, ((0, 0), (0, 0), (ph, ph), (pw, pw)))
    cols = []
    for i in range(kh):
        for j in range(kw):
            hs = i * dh
            ws = j * dw
            patch = xp[:, :, hs:hs + sh * (oh - 1) + 1:sh,
                             ws:ws + sw * (ow - 1) + 1:sw]
            cols.append(patch)
    col = jnp.stack(cols, axis=2)                    # (N, C, kh*kw, oh, ow)
    col = col.reshape(N, C * kh * kw, oh * ow)       # channel-major = F.unfold
    return col, oh, ow


def reference_forward(x, w_cos, w_sin, bias, ks, stride, padding, dilation):
    N = x.shape[0]
    O = w_cos.shape[0]
    col, oh, ow = _unfold_nchw(x, ks, stride, padding, dilation)
    inpt = jnp.transpose(col, (0, 2, 1))                               # (N, L, K)
    hi = jax.lax.Precision.HIGHEST
    out_cos = jnp.matmul(inpt, w_cos.T, precision=hi)
    out_sin = jnp.matmul(inpt, w_sin.T, precision=hi)
    eps = 1e-5
    a_gt = out_cos > 0
    b_gt = out_sin > 0
    ab_eq = a_gt == b_gt
    theta = jnp.where(ab_eq,
                      jnp.arctan(out_sin / (out_cos + eps)),
                      -jnp.arctan(out_cos / (out_sin + eps)))
    peak = jnp.where(ab_eq,
                     jnp.where(a_gt, math.pi / 2.0, -math.pi / 2.0),
                     jnp.where(b_gt, 0.0, -math.pi))
    theta = peak - theta
    out = jnp.sin(theta) * out_cos + jnp.cos(theta) * out_sin          # (N, L, O)
    out = jnp.transpose(out, (0, 2, 1)) + bias[None, :, None]
    out = out.reshape(N, O, oh, ow)
    th = jnp.transpose(theta / math.pi, (0, 2, 1)).reshape(N, O, oh, ow)
    return jnp.concatenate([out, th], axis=1)


# ------------------------------------ main ------------------------------------

if __name__ == "__main__":
    key = jax.random.PRNGKey(0)
    N, C, H, W = 2, 4, 16, 16
    O = 8
    ks = (3, 3)
    stride = (1, 1)
    padding = (1, 1)
    dilation = (1, 1)
    K = C * ks[0] * ks[1]

    # same distribution as reset_parameters()
    stdv = 1.0 / math.sqrt(C * ks[0] * ks[1])
    k1, k2, k3 = jax.random.split(key, 3)
    weight = jax.random.uniform(k1, (O, K), jnp.float32, -stdv, stdv)
    bias = jax.random.uniform(k2, (O,), jnp.float32, -stdv, stdv)
    x = jax.random.normal(k3, (N, C, H, W), jnp.float32)

    out = conv2d_d_forward(x, weight, bias, ks, stride, padding, dilation)
    out = jax.block_until_ready(out)

    OH = (H + 2 * padding[0] - dilation[0] * (ks[0] - 1) - 1) // stride[0] + 1
    OW = (W + 2 * padding[1] - dilation[1] * (ks[1] - 1) - 1) // stride[1] + 1
    assert out.shape == (N, 2 * O, OH, OW), out.shape
    assert bool(jnp.all(jnp.isfinite(out)))

    # Check 1 (tight): reference fed the SAME bf16-quantized operands, so only
    # accumulation-order / atan-polynomial / approx-reciprocal diffs remain.
    xq = x.astype(jnp.bfloat16).astype(jnp.float32)
    cq = jnp.cos(weight).astype(jnp.bfloat16).astype(jnp.float32)
    sq = jnp.sin(weight).astype(jnp.bfloat16).astype(jnp.float32)
    ref_q = reference_forward(xq, cq, sq, bias, ks, stride, padding, dilation)
    close_q = jnp.abs(out - ref_q) <= (1e-2 + 1e-2 * jnp.abs(ref_q))
    assert float(jnp.mean(close_q.astype(jnp.float32))) > 0.995

    # Check 2 (loose): full-f32 reference; bf16 MXU inputs flip the sign-based
    # theta branches for a small fraction of near-zero elements, so use a
    # fraction-of-close criterion.
    ref_f = reference_forward(x, jnp.cos(weight), jnp.sin(weight), bias,
                              ks, stride, padding, dilation)
    close_f = jnp.abs(out - ref_f) <= (5e-2 + 5e-2 * jnp.abs(ref_f))
    assert float(jnp.mean(close_f.astype(jnp.float32))) > 0.96

    print("KERNEL_OK")
</pallas_src>

<mosaic_0001>
module attributes {stable_mosaic.version = 11 : i64} {
  func.func @_conv2d_d_kernel(%arg0: i32, %arg1: i32, %arg2: memref<1x1x4x384xbf16, #tpu.memory_space<vmem>>, %arg3: memref<16x36xbf16, #tpu.memory_space<vmem>>, %arg4: memref<8x1xf32, #tpu.memory_space<vmem>>, %arg5: memref<1x16x288xf32, #tpu.memory_space<vmem>>, %arg6: memref<36x288xbf16, #tpu.memory_space<vmem>>) attributes {dimension_semantics = [#tpu.dimension_semantics<parallel>, #tpu.dimension_semantics<parallel>], iteration_bounds = array<i64: 2, 1>, scalar_prefetch = 0 : i64, scratch_operands = 1 : i64, tpu.core_type = #tpu.core_type<tc>, window_params = [{transform_indices = @transform_0, window_bounds = array<i64: 1, 1, 4, 384>}, {pipeline_mode = #tpu.pipeline_mode<synchronous>, transform_indices = @transform_1, window_bounds = array<i64: 16, 36>}, {pipeline_mode = #tpu.pipeline_mode<synchronous>, transform_indices = @transform_2, window_bounds = array<i64: 8, 1>}, {transform_indices = @transform_3, window_bounds = array<i64: 1, 16, 288>}]} {
    %c0 = arith.constant 0 : index
    %c0_0 = arith.constant 0 : index
    %c0_1 = arith.constant 0 : index
    %c0_2 = arith.constant 0 : index
    %0 = vector.load %arg2[%c0, %c0_0, %c0_1, %c0_2] : memref<1x1x4x384xbf16, #tpu.memory_space<vmem>>, vector<1x1x4x288xbf16>
    %1 = vector.shape_cast %0 : vector<1x1x4x288xbf16> to vector<4x288xbf16>
    %c0_3 = arith.constant 0 : index
    %c0_4 = arith.constant 0 : index
    %2 = vector.load %arg6[%c0_3, %c0_4] : memref<36x288xbf16, #tpu.memory_space<vmem>>, vector<4x288xbf16>
    tpu.vector_store %arg6[%c0_3, %c0_4], %1 {strides = array<i32>} : memref<36x288xbf16, #tpu.memory_space<vmem>>, vector<4x288xbf16>,
    %c0_5 = arith.constant 0 : index
    %c0_6 = arith.constant 0 : index
    %c0_7 = arith.constant 0 : index
    %c1 = arith.constant 1 : index
    %3 = vector.load %arg2[%c0_5, %c0_6, %c0_7, %c1] : memref<1x1x4x384xbf16, #tpu.memory_space<vmem>>, vector<1x1x4x288xbf16>
    %4 = vector.shape_cast %3 : vector<1x1x4x288xbf16> to vector<4x288xbf16>
    %c4 = arith.constant 4 : index
    %c0_8 = arith.constant 0 : index
    %5 = vector.load %arg6[%c4, %c0_8] : memref<36x288xbf16, #tpu.memory_space<vmem>>, vector<4x288xbf16>
    tpu.vector_store %arg6[%c4, %c0_8], %4 {strides = array<i32>} : memref<36x288xbf16, #tpu.memory_space<vmem>>, vector<4x288xbf16>,
    %c0_9 = arith.constant 0 : index
    %c0_10 = arith.constant 0 : index
    %c0_11 = arith.constant 0 : index
    %c2 = arith.constant 2 : index
    %6 = vector.load %arg2[%c0_9, %c0_10, %c0_11, %c2] : memref<1x1x4x384xbf16, #tpu.memory_space<vmem>>, vector<1x1x4x288xbf16>
    %7 = vector.shape_cast %6 : vector<1x1x4x288xbf16> to vector<4x288xbf16>
    %c8 = arith.constant 8 : index
    %c0_12 = arith.constant 0 : index
    %8 = vector.load %arg6[%c8, %c0_12] : memref<36x288xbf16, #tpu.memory_space<vmem>>, vector<4x288xbf16>
    tpu.vector_store %arg6[%c8, %c0_12], %7 {strides = array<i32>} : memref<36x288xbf16, #tpu.memory_space<vmem>>, vector<4x288xbf16>,
    %c0_13 = arith.constant 0 : index
    %c0_14 = arith.constant 0 : index
    %c0_15 = arith.constant 0 : index
    %c18 = arith.constant 18 : index
    %9 = vector.load %arg2[%c0_13, %c0_14, %c0_15, %c18] : memref<1x1x4x384xbf16, #tpu.memory_space<vmem>>, vector<1x1x4x288xbf16>
    %10 = vector.shape_cast %9 : vector<1x1x4x288xbf16> to vector<4x288xbf16>
    %c12 = arith.constant 12 : index
    %c0_16 = arith.constant 0 : index
    %11 = vector.load %arg6[%c12, %c0_16] : memref<36x288xbf16, #tpu.memory_space<vmem>>, vector<4x288xbf16>
    tpu.vector_store %arg6[%c12, %c0_16], %10 {strides = array<i32>} : memref<36x288xbf16, #tpu.memory_space<vmem>>, vector<4x288xbf16>,
    %c0_17 = arith.constant 0 : index
    %c0_18 = arith.constant 0 : index
    %c0_19 = arith.constant 0 : index
    %c19 = arith.constant 19 : index
    %12 = vector.load %arg2[%c0_17, %c0_18, %c0_19, %c19] : memref<1x1x4x384xbf16, #tpu.memory_space<vmem>>, vector<1x1x4x288xbf16>
    %13 = vector.shape_cast %12 : vector<1x1x4x288xbf16> to vector<4x288xbf16>
    %c16 = arith.constant 16 : index
    %c0_20 = arith.constant 0 : index
    %14 = vector.load %arg6[%c16, %c0_20] : memref<36x288xbf16, #tpu.memory_space<vmem>>, vector<4x288xbf16>
    tpu.vector_store %arg6[%c16, %c0_20], %13 {strides = array<i32>} : memref<36x288xbf16, #tpu.memory_space<vmem>>, vector<4x288xbf16>,
    %c0_21 = arith.constant 0 : index
    %c0_22 = arith.constant 0 : index
    %c0_23 = arith.constant 0 : index
    %c20 = arith.constant 20 : index
    %15 = vector.load %arg2[%c0_21, %c0_22, %c0_23, %c20] : memref<1x1x4x384xbf16, #tpu.memory_space<vmem>>, vector<1x1x4x288xbf16>
    %16 = vector.shape_cast %15 : vector<1x1x4x288xbf16> to vector<4x288xbf16>
    %c20_24 = arith.constant 20 : index
    %c0_25 = arith.constant 0 : index
    %17 = vector.load %arg6[%c20_24, %c0_25] : memref<36x288xbf16, #tpu.memory_space<vmem>>, vector<4x288xbf16>
    tpu.vector_store %arg6[%c20_24, %c0_25], %16 {strides = array<i32>} : memref<36x288xbf16, #tpu.memory_space<vmem>>, vector<4x288xbf16>,
    %c0_26 = arith.constant 0 : index
    %c0_27 = arith.constant 0 : index
    %c0_28 = arith.constant 0 : index
    %c36 = arith.constant 36 : index
    %18 = vector.load %arg2[%c0_26, %c0_27, %c0_28, %c36] : memref<1x1x4x384xbf16, #tpu.memory_space<vmem>>, vector<1x1x4x288xbf16>
    %19 = vector.shape_cast %18 : vector<1x1x4x288xbf16> to vector<4x288xbf16>
    %c24 = arith.constant 24 : index
    %c0_29 = arith.constant 0 : index
    %20 = vector.load %arg6[%c24, %c0_29] : memref<36x288xbf16, #tpu.memory_space<vmem>>, vector<4x288xbf16>
    tpu.vector_store %arg6[%c24, %c0_29], %19 {strides = array<i32>} : memref<36x288xbf16, #tpu.memory_space<vmem>>, vector<4x288xbf16>,
    %c0_30 = arith.constant 0 : index
    %c0_31 = arith.constant 0 : index
    %c0_32 = arith.constant 0 : index
    %c37 = arith.constant 37 : index
    %21 = vector.load %arg2[%c0_30, %c0_31, %c0_32, %c37] : memref<1x1x4x384xbf16, #tpu.memory_space<vmem>>, vector<1x1x4x288xbf16>
    %22 = vector.shape_cast %21 : vector<1x1x4x288xbf16> to vector<4x288xbf16>
    %c28 = arith.constant 28 : index
    %c0_33 = arith.constant 0 : index
    %23 = vector.load %arg6[%c28, %c0_33] : memref<36x288xbf16, #tpu.memory_space<vmem>>, vector<4x288xbf16>
    tpu.vector_store %arg6[%c28, %c0_33], %22 {strides = array<i32>} : memref<36x288xbf16, #tpu.memory_space<vmem>>, vector<4x288xbf16>,
    %c0_34 = arith.constant 0 : index
    %c0_35 = arith.constant 0 : index
    %c0_36 = arith.constant 0 : index
    %c38 = arith.constant 38 : index
    %24 = vector.load %arg2[%c0_34, %c0_35, %c0_36, %c38] : memref<1x1x4x384xbf16, #tpu.memory_space<vmem>>, vector<1x1x4x288xbf16>
    %25 = vector.shape_cast %24 : vector<1x1x4x288xbf16> to vector<4x288xbf16>
    %c32 = arith.constant 32 : index
    %c0_37 = arith.constant 0 : index
    %26 = vector.load %arg6[%c32, %c0_37] : memref<36x288xbf16, #tpu.memory_space<vmem>>, vector<4x288xbf16>
    tpu.vector_store %arg6[%c32, %c0_37], %25 {strides = array<i32>} : memref<36x288xbf16, #tpu.memory_space<vmem>>, vector<4x288xbf16>,
    %c0_38 = arith.constant 0 : index
    %c0_39 = arith.constant 0 : index
    %27 = vector.load %arg3[%c0_38, %c0_39] : memref<16x36xbf16, #tpu.memory_space<vmem>>, vector<16x36xbf16>
    %c0_40 = arith.constant 0 : index
    %c0_41 = arith.constant 0 : index
    %28 = vector.load %arg6[%c0_40, %c0_41] : memref<36x288xbf16, #tpu.memory_space<vmem>>, vector<36x288xbf16>
    %cst = arith.constant dense<0.000000e+00> : vector<16x288xf32>
    %29 = tpu.matmul %27, %28, %cst {dimension_numbers = #tpu.dot_dimension_numbers<[1], [0], [0], [1], [0, 0, 1, 1], [], []>} : vector<16x36xbf16>, vector<36x288xbf16>, vector<16x288xf32> -> vector<16x288xf32>
    %30 = vector.extract_strided_slice %29 {offsets = [0, 0], sizes = [8, 288], strides = [1, 1]} : vector<16x288xf32> to vector<8x288xf32>
    %31 = vector.extract_strided_slice %29 {offsets = [8, 0], sizes = [8, 288], strides = [1, 1]} : vector<16x288xf32> to vector<8x288xf32>
    %cst_42 = arith.constant 0.000000e+00 : f32
    %32 = vector.broadcast %cst_42 : f32 to vector<8x288xf32>
    %33 = arith.cmpf ogt, %30, %32 : vector<8x288xf32>
    %cst_43 = arith.constant 0.000000e+00 : f32
    %34 = vector.broadcast %cst_43 : f32 to vector<8x288xf32>
    %35 = arith.cmpf ogt, %31, %34 : vector<8x288xf32>
    %36 = arith.xori %33, %35 : vector<8x288xi1>
    %cst_44 = arith.constant dense<true> : vector<8x288xi1>
    %37 = arith.xori %36, %cst_44 : vector<8x288xi1>
    %cst_45 = arith.constant 1.000000e+00 : f32
    %cst_46 = arith.constant -1.000000e+00 : f32
    %38 = vector.broadcast %cst_45 : f32 to vector<8x288xf32>
    %39 = vector.broadcast %cst_46 : f32 to vector<8x288xf32>
    %40 = arith.select %33, %38, %39 : vector<8x288xi1>, vector<8x288xf32>
    %cst_47 = arith.constant 1.000000e+00 : f32
    %cst_48 = arith.constant -1.000000e+00 : f32
    %41 = vector.broadcast %cst_47 : f32 to vector<8x288xf32>
    %42 = vector.broadcast %cst_48 : f32 to vector<8x288xf32>
    %43 = arith.select %35, %41, %42 : vector<8x288xi1>, vector<8x288xf32>
    %44 = arith.mulf %40, %43 : vector<8x288xf32>
    %45 = arith.select %37, %31, %30 : vector<8x288xi1>, vector<8x288xf32>
    %46 = arith.select %37, %30, %31 : vector<8x288xi1>, vector<8x288xf32>
    %cst_49 = arith.constant 9.99999974E-6 : f32
    %47 = vector.broadcast %cst_49 : f32 to vector<8x288xf32>
    %48 = arith.addf %46, %47 : vector<8x288xf32>
    %49 = arith.mulf %44, %45 : vector<8x288xf32>
    %50 = tpu.reciprocal %48 {approx = true} : vector<8x288xf32> -> vector<8x288xf32>
    %51 = arith.mulf %49, %50 : vector<8x288xf32>
    %cst_50 = arith.constant 0.000000e+00 : f32
    %52 = vector.broadcast %cst_50 : f32 to vector<8x288xf32>
    %53 = arith.cmpf olt, %51, %52 : vector<8x288xf32>
    %cst_51 = arith.constant -1.000000e+00 : f32
    %cst_52 = arith.constant 1.000000e+00 : f32
    %54 = vector.broadcast %cst_51 : f32 to vector<8x288xf32>
    %55 = vector.broadcast %cst_52 : f32 to vector<8x288xf32>
    %56 = arith.select %53, %54, %55 : vector<8x288xi1>, vector<8x288xf32>
    %57 = math.absf %51 : vector<8x288xf32>
    %cst_53 = arith.constant 2.41421366 : f32
    %58 = vector.broadcast %cst_53 : f32 to vector<8x288xf32>
    %59 = arith.cmpf ogt, %57, %58 : vector<8x288xf32>
    %cst_54 = arith.constant 0.414213568 : f32
    %60 = vector.broadcast %cst_54 : f32 to vector<8x288xf32>
    %61 = arith.cmpf ogt, %57, %60 : vector<8x288xf32>
    %cst_55 = arith.constant dense<true> : vector<8x288xi1>
    %62 = arith.xori %59, %cst_55 : vector<8x288xi1>
    %63 = arith.andi %61, %62 : vector<8x288xi1>
    %cst_56 = arith.constant 0.785398185 : f32
    %cst_57 = arith.constant 0.000000e+00 : f32
    %64 = vector.broadcast %cst_56 : f32 to vector<8x288xf32>
    %65 = vector.broadcast %cst_57 : f32 to vector<8x288xf32>
    %66 = arith.select %63, %64, %65 : vector<8x288xi1>, vector<8x288xf32>
    %cst_58 = arith.constant 1.57079637 : f32
    %67 = vector.broadcast %cst_58 : f32 to vector<8x288xf32>
    %68 = arith.select %59, %67, %66 : vector<8x288xi1>, vector<8x288xf32>
    %cst_59 = arith.constant 1.000000e+00 : f32
    %69 = vector.broadcast %cst_59 : f32 to vector<8x288xf32>
    %70 = arith.subf %57, %69 : vector<8x288xf32>
    %71 = arith.select %63, %70, %57 : vector<8x288xi1>, vector<8x288xf32>
    %cst_60 = arith.constant -1.000000e+00 : f32
    %72 = vector.broadcast %cst_60 : f32 to vector<8x288xf32>
    %73 = arith.select %59, %72, %71 : vector<8x288xi1>, vector<8x288xf32>
    %cst_61 = arith.constant 1.000000e+00 : f32
    %74 = vector.broadcast %cst_61 : f32 to vector<8x288xf32>
    %75 = arith.addf %57, %74 : vector<8x288xf32>
    %cst_62 = arith.constant 1.000000e+00 : f32
    %76 = vector.broadcast %cst_62 : f32 to vector<8x288xf32>
    %77 = arith.select %63, %75, %76 : vector<8x288xi1>, vector<8x288xf32>
    %78 = arith.select %59, %57, %77 : vector<8x288xi1>, vector<8x288xf32>
    %79 = tpu.reciprocal %78 {approx = true} : vector<8x288xf32> -> vector<8x288xf32>
    %80 = arith.mulf %73, %79 : vector<8x288xf32>
    %81 = arith.mulf %80, %80 : vector<8x288xf32>
    %cst_63 = arith.constant 0.0805374458 : f32
    %82 = vector.broadcast %cst_63 : f32 to vector<8x288xf32>
    %83 = arith.mulf %82, %81 : vector<8x288xf32>
    %cst_64 = arith.constant 0.138776854 : f32
    %84 = vector.broadcast %cst_64 : f32 to vector<8x288xf32>
    %85 = arith.subf %83, %84 : vector<8x288xf32>
    %86 = arith.mulf %85, %81 : vector<8x288xf32>
    %cst_65 = arith.constant 0.199777111 : f32
    %87 = vector.broadcast %cst_65 : f32 to vector<8x288xf32>
    %88 = arith.addf %86, %87 : vector<8x288xf32>
    %89 = arith.mulf %88, %81 : vector<8x288xf32>
    %cst_66 = arith.constant 0.333329499 : f32
    %90 = vector.broadcast %cst_66 : f32 to vector<8x288xf32>
    %91 = arith.subf %89, %90 : vector<8x288xf32>
    %92 = arith.mulf %91, %81 : vector<8x288xf32>
    %93 = arith.mulf %92, %80 : vector<8x288xf32>
    %94 = arith.addf %93, %80 : vector<8x288xf32>
    %95 = arith.addf %68, %94 : vector<8x288xf32>
    %96 = arith.mulf %56, %95 : vector<8x288xf32>
    %97 = arith.mulf %51, %51 : vector<8x288xf32>
    %cst_67 = arith.constant 1.000000e+00 : f32
    %98 = vector.broadcast %cst_67 : f32 to vector<8x288xf32>
    %99 = arith.addf %98, %97 : vector<8x288xf32>
    %100 = math.rsqrt %99 : vector<8x288xf32>
    %101 = arith.mulf %51, %100 : vector<8x288xf32>
    %102 = arith.addf %40, %43 : vector<8x288xf32>
    %cst_68 = arith.constant 5.000000e-01 : f32
    %103 = vector.broadcast %cst_68 : f32 to vector<8x288xf32>
    %104 = arith.mulf %103, %102 : vector<8x288xf32>
    %105 = arith.subf %43, %40 : vector<8x288xf32>
    %cst_69 = arith.constant 5.000000e-01 : f32
    %106 = vector.broadcast %cst_69 : f32 to vector<8x288xf32>
    %107 = arith.mulf %106, %105 : vector<8x288xf32>
    %cst_70 = arith.constant 1.57079637 : f32
    %108 = vector.broadcast %cst_70 : f32 to vector<8x288xf32>
    %109 = arith.mulf %108, %43 : vector<8x288xf32>
    %cst_71 = arith.constant 1.000000e+00 : f32
    %110 = vector.broadcast %cst_71 : f32 to vector<8x288xf32>
    %111 = arith.subf %44, %110 : vector<8x288xf32>
    %cst_72 = arith.constant 0.785398185 : f32
    %112 = vector.broadcast %cst_72 : f32 to vector<8x288xf32>
    %113 = arith.mulf %112, %111 : vector<8x288xf32>
    %114 = arith.addf %109, %113 : vector<8x288xf32>
    %115 = arith.mulf %104, %100 : vector<8x288xf32>
    %116 = arith.mulf %107, %101 : vector<8x288xf32>
    %117 = arith.subf %115, %116 : vector<8x288xf32>
    %118 = arith.mulf %107, %100 : vector<8x288xf32>
    %119 = arith.mulf %104, %101 : vector<8x288xf32>
    %120 = arith.addf %118, %119 : vector<8x288xf32>
    %121 = arith.mulf %117, %30 : vector<8x288xf32>
    %122 = arith.mulf %120, %31 : vector<8x288xf32>
    %123 = arith.addf %121, %122 : vector<8x288xf32>
    %c0_73 = arith.constant 0 : index
    %c0_74 = arith.constant 0 : index
    %124 = vector.load %arg4[%c0_73, %c0_74] : memref<8x1xf32, #tpu.memory_space<vmem>>, vector<8x1xf32>
    %125 = vector.broadcast %124 : vector<8x1xf32> to vector<8x288xf32>
    %126 = arith.addf %123, %125 : vector<8x288xf32>
    %c0_75 = arith.constant 0 : index
    %c0_76 = arith.constant 0 : index
    %c0_77 = arith.constant 0 : index
    %127 = vector.load %arg5[%c0_75, %c0_76, %c0_77] : memref<1x16x288xf32, #tpu.memory_space<vmem>>, vector<1x8x288xf32>
    %128 = vector.shape_cast %127 : vector<1x8x288xf32> to vector<8x288xf32>
    %129 = vector.shape_cast %126 : vector<8x288xf32> to vector<1x8x288xf32>
    tpu.vector_store %arg5[%c0_75, %c0_76, %c0_77], %129 {strides = array<i32>} : memref<1x16x288xf32, #tpu.memory_space<vmem>>, vector<1x8x288xf32>,
    %130 = arith.subf %114, %96 : vector<8x288xf32>
    %cst_78 = arith.constant 0.318309873 : f32
    %131 = vector.broadcast %cst_78 : f32 to vector<8x288xf32>
    %132 = arith.mulf %130, %131 : vector<8x288xf32>
    %c0_79 = arith.constant 0 : index
    %c8_80 = arith.constant 8 : index
    %c0_81 = arith.constant 0 : index
    %133 = vector.load %arg5[%c0_79, %c8_80, %c0_81] : memref<1x16x288xf32, #tpu.memory_space<vmem>>, vector<1x8x288xf32>
    %134 = vector.shape_cast %133 : vector<1x8x288xf32> to vector<8x288xf32>
    %135 = vector.shape_cast %132 : vector<8x288xf32> to vector<1x8x288xf32>
    tpu.vector_store %arg5[%c0_79, %c8_80, %c0_81], %135 {strides = array<i32>} : memref<1x16x288xf32, #tpu.memory_space<vmem>>, vector<1x8x288xf32>,
    return
  }
  func.func @transform_0(%arg0: i32, %arg1: i32) -> (i32, i32, i32, i32) {
    %c0_i32 = arith.constant 0 : i32
    %c0_i32_0 = arith.constant 0 : i32
    %c0_i32_1 = arith.constant 0 : i32
    return %arg0, %arg1, %c0_i32, %c0_i32_0 : i32, i32, i32, i32
  }
  func.func @transform_1(%arg0: i32, %arg1: i32) -> (i32, i32) {
    %c0_i32 = arith.constant 0 : i32
    %c0_i32_0 = arith.constant 0 : i32
    %c0_i32_1 = arith.constant 0 : i32
    return %c0_i32, %c0_i32_0 : i32, i32
  }
  func.func @transform_2(%arg0: i32, %arg1: i32) -> (i32, i32) {
    %c0_i32 = arith.constant 0 : i32
    %c0_i32_0 = arith.constant 0 : i32
    %c0_i32_1 = arith.constant 0 : i32
    return %c0_i32, %c0_i32_0 : i32, i32
  }
  func.func @transform_3(%arg0: i32, %arg1: i32) -> (i32, i32, i32) {
    %c0_i32 = arith.constant 0 : i32
    %c0_i32_0 = arith.constant 0 : i32
    return %arg0, %c0_i32, %arg1 : i32, i32, i32
  }
}

</mosaic_0001>

<llo_original>
// kernel: tpu_custom_call.1
$region0: #{tpu_custom_call.1}
  #allocation0 [shape = 'u32[]', space=smem, size = 0x4, offset = 0x4, fixed_abs, tag = 'smem constant byte address 0x4 - core index']
  #allocation1 [shape = 'u32[144,128]{1,0:T(1,128)}', space=vmem, size = 0x12000, scoped, tag = 'internal scratch']
  #allocation2 [shape = 'bf16[36,288]{1,0:T(8,128)(2,1)}', space=vmem, size = 0x7800, scoped, tag = 'scratch operand']
  %s0 = inlined_call_operand.hbm [shape: bf16[2,1,4,384], index: 0, kind: input, shape index: {}]
  %s1 = inlined_call_operand.vmem [shape: bf16[16,36], index: 1, kind: input, shape index: {}]
  %s2 = inlined_call_operand.vmem [shape: f32[8,1], index: 2, kind: input, shape index: {}]
  %s3 = inlined_call_operand.hbm [shape: f32[2,16,288], index: 3, kind: output, shape index: {}]
  %s4 = sld [smem:[#allocation0]]
  $region49: #{tpu_custom_call.1} parent=0
    _
  %s6 = ssub.s32 1, %s4
  %s7 = scalar_select 0, %s6, %s4
  $region1: #{tpu_custom_call.1} parent=0
    #allocation3 [shape = 'u8[6144]{0}', space=vmem, size = 0x1800, scoped, tag = 'input window, operand 0']
    #allocation4 [shape = 's32[2]{0}', space=sflag, size = 0x8, scoped, tag = 'scoped memory for tpu_custom_call.1']
    #allocation5 [shape = 's32[2]{0}', space=sflag, size = 0x8, scoped, tag = 'scoped memory for tpu_custom_call.1']
    #allocation6 [shape = 'u8[49152]{0}', space=vmem, size = 0xc000, scoped, tag = 'output window, operand 0']
    %8 = vsyncpa [#allocation4], 0
    %s9 = scalar_lea.sflag [#allocation4], 1
    %10 = vsyncpa %s9, 0
    %11 = vsyncpa [#allocation5], 0
    %s12 = scalar_lea.sflag [#allocation5], 1
    %13 = vsyncpa %s12, 0
    loop: start=0, step=1, limit=4
    $region2: #{tpu_custom_call.1} parent=1 // loop_pre_header
      _
    $region3: #{tpu_custom_call.1} parent=1 // loop_header
      %s15 = sphi 0, %s19
      %p16 = scmp.ge.s32.totalorder %s15, 4
      %s22 = sphi 0, %s34
      %s23 = sphi 0, %s30
      %s24 = sphi 0, %s22
      %s25 = sphi 0, %s23
      %s26 = sphi 0, %s24
      %s27 = sphi 0, %s25
      %s39 = sphi 0, %s41
      %s42 = sphi 0, %s39
      %s43 = sphi 0, %s42
      %s59 = sphi 0, %s43
      %s63 = sphi 0, %s63
      %s65 = sphi 0, %s63
      %s66 = sphi 0, %s65
      %s80 = sphi 0, %s66
      %s84 = sphi 0, %s84
      %s86 = sphi 0, %s84
      %s87 = sphi 0, %s86
      %s101 = sphi 0, %s87
      %s109 = sphi 0, %s111
      %s112 = sphi 0, %s109
      %s113 = sphi 0, %s112
      %s129 = sphi 0, %s113
    $region4: #{tpu_custom_call.1} parent=1 // loop_header_branch
      %18 = sbr.rel (%p16) target = $region8
    $region5: #{tpu_custom_call.1} parent=1 // loop_body
      %s20 = ssub.s32 %s15, 1
      %s21 = ssub.s32 %s15, 2
      %s28 = sadd.s32 1, %s23
      %p29 = scmp.ge.s32.totalorder %s28, 1
      %s30 = scalar_select %p29, 0, %s28
      %s31 = sadd.s32 1, %s22
      %s32 = scalar_select %p29, %s31, %s22
      %p33 = scmp.ge.s32.totalorder %s32, 2
      %s34 = scalar_select %p33, 0, %s32
      %s35 = ssub.s32 %s22, %s34
      %s36 = ssub.s32 %s23, %s30
      %s37 = sor.u32 %s35, %s36
      %p38 = scmp.eq.s32.totalorder %s37, 0
      %s40 = sadd.s32 %s39, 1
      %s41 = scalar_select %p38, %s39, %s40
      %p44 = pneg %p38
      %p45 = scmp.eq.s32.totalorder %s15, 1
      %p46 = por %p44, %p45
      %p47 = scmp.ne.s32.totalorder %s39, %s42
      %p48 = scmp.eq.s32.totalorder %s15, 0
      %p49 = por %p47, %p48
      %p50 = scmp.ne.s32.totalorder %s39, %s42
      %p51 = scmp.eq.s32.totalorder %s20, 1
      %p52 = por %p50, %p51
      %p53 = scmp.ne.s32.totalorder %s42, %s43
      %p54 = scmp.eq.s32.totalorder %s20, 0
      %p55 = por %p53, %p54
      %p56 = scmp.ne.s32.totalorder %s42, %s43
      %p57 = scmp.eq.s32.totalorder %s21, 1
      %p58 = por %p56, %p57
      %p60 = scmp.ne.s32.totalorder %s43, %s59
      %p61 = scmp.eq.s32.totalorder %s21, 0
      %p62 = por %p60, %p61
      %s64 = sadd.s32 %s63, 1
      %p67 = scmp.eq.s32.totalorder %s15, 1
      %p68 = scmp.ne.s32.totalorder %s63, %s65
      %p69 = scmp.eq.s32.totalorder %s15, 0
      %p70 = por %p68, %p69
      %p71 = scmp.ne.s32.totalorder %s63, %s65
      %p72 = scmp.eq.s32.totalorder %s20, 1
      %p73 = por %p71, %p72
      %p74 = scmp.ne.s32.totalorder %s65, %s66
      %p75 = scmp.eq.s32.totalorder %s20, 0
      %p76 = por %p74, %p75
      %p77 = scmp.ne.s32.totalorder %s65, %s66
      %p78 = scmp.eq.s32.totalorder %s21, 1
      %p79 = por %p77, %p78
      %p81 = scmp.ne.s32.totalorder %s66, %s80
      %p82 = scmp.eq.s32.totalorder %s21, 0
      %p83 = por %p81, %p82
      %s85 = sadd.s32 %s84, 1
      %p88 = scmp.eq.s32.totalorder %s15, 1
      %p89 = scmp.ne.s32.totalorder %s84, %s86
      %p90 = scmp.eq.s32.totalorder %s15, 0
      %p91 = por %p89, %p90
      %p92 = scmp.ne.s32.totalorder %s84, %s86
      %p93 = scmp.eq.s32.totalorder %s20, 1
      %p94 = por %p92, %p93
      %p95 = scmp.ne.s32.totalorder %s86, %s87
      %p96 = scmp.eq.s32.totalorder %s20, 0
      %p97 = por %p95, %p96
      %p98 = scmp.ne.s32.totalorder %s86, %s87
      %p99 = scmp.eq.s32.totalorder %s21, 1
      %p100 = por %p98, %p99
      %p102 = scmp.ne.s32.totalorder %s87, %s101
      %p103 = scmp.eq.s32.totalorder %s21, 0
      %p104 = por %p102, %p103
      %s105 = ssub.s32 %s22, %s34
      %s106 = ssub.s32 %s23, %s30
      %s107 = sor.u32 %s105, %s106
      %p108 = scmp.eq.s32.totalorder %s107, 0
      %s110 = sadd.s32 %s109, 1
      %s111 = scalar_select %p108, %s109, %s110
      %p114 = pneg %p108
      %p115 = scmp.eq.s32.totalorder %s15, 1
      %p116 = por %p114, %p115
      %p117 = scmp.ne.s32.totalorder %s109, %s112
      %p118 = scmp.eq.s32.totalorder %s15, 0
      %p119 = por %p117, %p118
      %p120 = scmp.ne.s32.totalorder %s109, %s112
      %p121 = scmp.eq.s32.totalorder %s20, 1
      %p122 = por %p120, %p121
      %p123 = scmp.ne.s32.totalorder %s112, %s113
      %p124 = scmp.eq.s32.totalorder %s20, 0
      %p125 = por %p123, %p124
      %p126 = scmp.ne.s32.totalorder %s112, %s113
      %p127 = scmp.eq.s32.totalorder %s21, 1
      %p128 = por %p126, %p127
      %p130 = scmp.ne.s32.totalorder %s113, %s129
      %p131 = scmp.eq.s32.totalorder %s21, 0
      %p132 = por %p130, %p131
      %p133 = scmp.le.s32.totalorder 1, %s15
      %p134 = scmp.lt.s32.totalorder %s15, 3
      %p135 = pnand %p133, %p134
      %p136 = pneg %p135
      // Predicated region
      $region9: #{tpu_custom_call.1} parent=5 // pred_check
        _
      $region10: #{tpu_custom_call.1} parent=5 // pred_check_branch
        %138 = sbr.rel (%p135) target = $region12
      $region11: #{tpu_custom_call.1} parent=5 // pred_region
        %s139 = ssub.s32 %s15, 1
        // Predicated region
        $region13: #{tpu_custom_call.1} parent=11 // pred_check
          %p140 = pneg %p76
        $region14: #{tpu_custom_call.1} parent=11 // pred_check_branch
          %142 = sbr.rel (%p140) target = $region16
        $region15: #{tpu_custom_call.1} parent=11 // pred_region
          _
        $region16: #{tpu_custom_call.1} parent=11 // pred_fallthru
          _
        // Predicated region
        $region17: #{tpu_custom_call.1} parent=11 // pred_check
          %p143 = pneg %p97
        $region18: #{tpu_custom_call.1} parent=11 // pred_check_branch
          %145 = sbr.rel (%p143) target = $region20
        $region19: #{tpu_custom_call.1} parent=11 // pred_region
          _
        $region20: #{tpu_custom_call.1} parent=11 // pred_fallthru
          _
      $region12: #{tpu_custom_call.1} parent=5 // pred_fallthru
        _
      %p146 = scmp.lt.s32.totalorder %s15, 2
      // Predicated region
      $region21: #{tpu_custom_call.1} parent=5 // pred_check
        %p147 = pneg %p146
      $region22: #{tpu_custom_call.1} parent=5 // pred_check_branch
        %149 = sbr.rel (%p147) target = $region24
      $region23: #{tpu_custom_call.1} parent=5 // pred_region
        // Predicated region
        $region25: #{tpu_custom_call.1} parent=23 // pred_check
          %p150 = pneg %p49
        $region26: #{tpu_custom_call.1} parent=23 // pred_check_branch
          %152 = sbr.rel (%p150) target = $region28
        $region27: #{tpu_custom_call.1} parent=23 // pred_region
          %s153 = sand.u32 %s39, 1
          %s154 = scalar_lea.sflag [#allocation4], %s153
          %s155 = sand.u32 %s39, 1
          %s156 = smul.addr %s155, 6
          %s157 = scalar_lea.vmem [#allocation3], %s156
          %s159 = ssub.s32 96, 96
          %160 = vsyncadd %s154, %s159
          %s161 = smul.addr %s23, 3
          %s162 = smul.addr %s22, 3
          %s163 = sadd.s32 %s161, %s162
          %s164 = smul.addr %s163, 32
          %s165 = scalar_lea.hbm %s0, %s164
          %s167 = sshll.u32 %s157, 4
          %s168 = int_to_ptr.vmem [resolvable:$true] %s167
          %170 = dma.hbm_to_vmem [thread:$0]  %s165, 96, %s168, %s154
        $region28: #{tpu_custom_call.1} parent=23 // pred_fallthru
          _
      $region24: #{tpu_custom_call.1} parent=5 // pred_fallthru
        _
      %p171 = scmp.le.s32.totalorder 1, %s15
      %p172 = scmp.lt.s32.totalorder %s15, 3
      %p173 = pnand %p171, %p172
      %p174 = pneg %p173
      // Predicated region
      $region29: #{tpu_custom_call.1} parent=5 // pred_check
        _
      $region30: #{tpu_custom_call.1} parent=5 // pred_check_branch
        %176 = sbr.rel (%p173) target = $region32
      $region31: #{tpu_custom_call.1} parent=5 // pred_region
        %s177 = ssub.s32 %s15, 1
        %s178 = sand.u32 %s42, 1
        %s179 = scalar_lea.sflag [#allocation4], %s178
        %s180 = sand.u32 %s42, 1
        %s181 = smul.addr %s180, 6
        %s182 = scalar_lea.vmem [#allocation3], %s181
        // Predicated region
        $region33: #{tpu_custom_call.1} parent=31 // pred_check
          %p183 = pneg %p55
        $region34: #{tpu_custom_call.1} parent=31 // pred_check_branch
          %185 = sbr.rel (%p183) target = $region36
        $region35: #{tpu_custom_call.1} parent=31 // pred_region
          %186 = dma.done %s179, 96
        $region36: #{tpu_custom_call.1} parent=31 // pred_fallthru
          _
        %s187 = sand.u32 %s42, 1
        %s188 = scalar_lea.sflag [#allocation4], %s187
        %s189 = sand.u32 %s42, 1
        %s190 = smul.addr %s189, 6
        %s191 = scalar_lea.vmem [#allocation3], %s190
        %p192 = pneg %p55
        %p193 = pneg %p52
        %p194 = pneg %p76
        %p195 = pneg %p73
        %p196 = pneg %p97
        %p197 = pneg %p94
        %p198 = pneg %p125
        %p199 = pneg %p122
        %s200 = sand.u32 %s112, 1
        %s201 = scalar_lea.sflag [#allocation5], %s200
        %s202 = sand.u32 %s112, 1
        %s203 = smul.addr %s202, 48
        %s204 = scalar_lea.vmem [#allocation6], %s203
        %s205 = smul.u32 3, %s25
        %v207 = vld [vmem:[%s182] sm:$0x3f]
        %v209 = vcombine.high %v207, %v207
        %v211 = vunpack.c.l.s4 1983009808
        %v212 = vunpack.c.0.s8 %v211
        %v213 = vlaneseq
        %v214 = vshrl.u32 %v213, 7
        %v215 = vsub.s32 %v212, %v214
        %v216 = vrot.slane %v207, %v215
        %v218 = vunpack.c.l.s4 1983009808
        %v219 = vunpack.c.0.s8 %v218
        %v220 = vlaneseq
        %v221 = vshrl.u32 %v220, 7
        %v222 = vsub.s32 %v219, %v221
        %v223 = vrot.slane %v209, %v222
        %226 = vst [vmem:[#allocation2] sm:$0x33] %v216
        %vm227 = vcmask 254976
        %228 = vst.msk [vmem:[#allocation2 + $0x8] sm:$0x3] %vm227, %v223
        %v229 = vld [vmem:[%s182] sm:$0x3f]
        %v231 = vcombine.low %v229, %v229
        %v233 = vunpack.c.l.s4 1983009808
        %v234 = vunpack.c.0.s8 %v233
        %v235 = vlaneseq
        %v236 = vshrl.u32 %v235, 7
        %v237 = vsub.s32 %v234, %v236
        %v238 = vrot.slane %v231, %v237
        %v240 = vunpack.c.l.s4 1983009808
        %v241 = vunpack.c.0.s8 %v240
        %v242 = vlaneseq
        %v243 = vshrl.u32 %v242, 7
        %v244 = vsub.s32 %v241, %v243
        %v245 = vrot.slane %v229, %v244
        %246 = vrot.lane.b32.xlu0 %v238, 127
        %v247 = vpop.permute.xlu0 %246
        %248 = vrot.lane.b32.xlu0 %v245, 127
        %v249 = vpop.permute.xlu0 %248
        %v250 = vrot.slane %v247, 4
        %v251 = vrot.slane %v249, 4
        %vm252 = vcmask 1043456
        %v253 = vsel %vm252, %v250, %v251
        %vm254 = vcmask 1039360
        %v255 = vsel %vm254, %v247, %v253
        %258 = vst [vmem:[#allocation2] sm:$0xcc] %v255
        %vm259 = vcmask 257026
        %260 = vst.msk [vmem:[#allocation2 + $0x8] sm:$0xc] %vm259, %v249
        %v261 = vld [vmem:[%s182] sm:$0x3f]
        %v263 = vcombine.high %v261, %v261
        %v265 = vunpack.c.l.s4 1983009808
        %v266 = vunpack.c.0.s8 %v265
        %v267 = vlaneseq
        %v268 = vshrl.u32 %v267, 7
        %v269 = vsub.s32 %v266, %v268
        %v270 = vrot.slane %v261, %v269
        %v272 = vunpack.c.l.s4 1983009808
        %v273 = vunpack.c.0.s8 %v272
        %v274 = vlaneseq
        %v275 = vshrl.u32 %v274, 7
        %v276 = vsub.s32 %v273, %v275
        %v277 = vrot.slane %v263, %v276
        %278 = vrot.lane.b32.xlu0 %v270, 126
        %v279 = vpop.permute.xlu0 %278
        %280 = vrot.lane.b32.xlu0 %v277, 126
        %v281 = vpop.permute.xlu0 %280
        %v282 = vrot.slane %v279, 4
        %v283 = vrot.slane %v281, 4
        %v284 = vsel %vm252, %v282, %v283
        %vm285 = vcmask 1031168
        %v286 = vsel %vm285, %v279, %v284
        %289 = vst [vmem:[#allocation2 + $0xc] sm:$0x33] %v286
        %290 = vst.msk [vmem:[#allocation2 + $0x14] sm:$0x3] %vm227, %v281
        %v291 = vld [vmem:[%s182] sm:$0x3f]
        %v293 = vcombine.low %v291, %v291
        %v295 = vunpack.c.l.s4 1983009808
        %v296 = vunpack.c.0.s8 %v295
        %v297 = vlaneseq
        %v298 = vshrl.u32 %v297, 7
        %v299 = vsub.s32 %v296, %v298
        %v300 = vrot.slane %v293, %v299
        %v302 = vunpack.c.l.s4 1983009808
        %v303 = vunpack.c.0.s8 %v302
        %v304 = vlaneseq
        %v305 = vshrl.u32 %v304, 7
        %v306 = vsub.s32 %v303, %v305
        %v307 = vrot.slane %v291, %v306
        %308 = vrot.lane.b32.xlu0 %v300, 110
        %v309 = vpop.permute.xlu0 %308
        %310 = vrot.lane.b32.xlu0 %v307, 110
        %v311 = vpop.permute.xlu0 %310
        %v312 = vrot.slane %v309, 4
        %v313 = vrot.slane %v311, 4
        %v314 = vsel %vm252, %v312, %v313
        %vm315 = vcmask 900096
        %v316 = vsel %vm315, %v309, %v314
        %319 = vst [vmem:[#allocation2 + $0xc] sm:$0xcc] %v316
        %320 = vst.msk [vmem:[#allocation2 + $0x14] sm:$0xc] %vm259, %v311
        %v321 = vld [vmem:[%s182] sm:$0x3f]
        %v323 = vcombine.high %v321, %v321
        %v325 = vunpack.c.l.s4 1983009808
        %v326 = vunpack.c.0.s8 %v325
        %v327 = vlaneseq
        %v328 = vshrl.u32 %v327, 7
        %v329 = vsub.s32 %v326, %v328
        %v330 = vrot.slane %v321, %v329
        %v332 = vunpack.c.l.s4 1983009808
        %v333 = vunpack.c.0.s8 %v332
        %v334 = vlaneseq
        %v335 = vshrl.u32 %v334, 7
        %v336 = vsub.s32 %v333, %v335
        %v337 = vrot.slane %v323, %v336
        %338 = vrot.lane.b32.xlu0 %v330, 109
        %v339 = vpop.permute.xlu0 %338
        %340 = vrot.lane.b32.xlu0 %v337, 109
        %v341 = vpop.permute.xlu0 %340
        %v342 = vrot.slane %v339, 4
        %v343 = vrot.slane %v341, 4
        %v344 = vsel %vm252, %v342, %v343
        %vm345 = vcmask 891904
        %v346 = vsel %vm345, %v339, %v344
        %349 = vst [vmem:[#allocation2 + $0x18] sm:$0x33] %v346
        %350 = vst.msk [vmem:[#allocation2 + $0x20] sm:$0x3] %vm227, %v341
        %v351 = vld [vmem:[%s182] sm:$0x3f]
        %v353 = vcombine.low %v351, %v351
        %v355 = vunpack.c.l.s4 1983009808
        %v356 = vunpack.c.0.s8 %v355
        %v357 = vlaneseq
        %v358 = vshrl.u32 %v357, 7
        %v359 = vsub.s32 %v356, %v358
        %v360 = vrot.slane %v353, %v359
        %v362 = vunpack.c.l.s4 1983009808
        %v363 = vunpack.c.0.s8 %v362
        %v364 = vlaneseq
        %v365 = vshrl.u32 %v364, 7
        %v366 = vsub.s32 %v363, %v365
        %v367 = vrot.slane %v351, %v366
        %368 = vrot.lane.b32.xlu0 %v360, 108
        %v369 = vpop.permute.xlu0 %368
        %370 = vrot.lane.b32.xlu0 %v367, 108
        %v371 = vpop.permute.xlu0 %370
        %v372 = vrot.slane %v369, 4
        %v373 = vrot.slane %v371, 4
        %v374 = vsel %vm252, %v372, %v373
        %vm375 = vcmask 883712
        %v376 = vsel %vm375, %v369, %v374
        %379 = vst [vmem:[#allocation2 + $0x18] sm:$0xcc] %v376
        %380 = vst.msk [vmem:[#allocation2 + $0x20] sm:$0xc] %vm259, %v371
        %v381 = vld [vmem:[%s182] sm:$0x3f]
        %v383 = vcombine.high %v381, %v381
        %v385 = vunpack.c.l.s4 1983009808
        %v386 = vunpack.c.0.s8 %v385
        %v387 = vlaneseq
        %v388 = vshrl.u32 %v387, 7
        %v389 = vsub.s32 %v386, %v388
        %v390 = vrot.slane %v381, %v389
        %v392 = vunpack.c.l.s4 1983009808
        %v393 = vunpack.c.0.s8 %v392
        %v394 = vlaneseq
        %v395 = vshrl.u32 %v394, 7
        %v396 = vsub.s32 %v393, %v395
        %v397 = vrot.slane %v383, %v396
        %398 = vrot.lane.b32.xlu0 %v390, 92
        %v399 = vpop.permute.xlu0 %398
        %400 = vrot.lane.b32.xlu0 %v397, 92
        %v401 = vpop.permute.xlu0 %400
        %v402 = vrot.slane %v399, 4
        %v403 = vrot.slane %v401, 4
        %v404 = vsel %vm252, %v402, %v403
        %vm405 = vcmask 752640
        %v406 = vsel %vm405, %v399, %v404
        %409 = vst [vmem:[#allocation2 + $0x24] sm:$0x33] %v406
        %410 = vst.msk [vmem:[#allocation2 + $0x2c] sm:$0x3] %vm227, %v401
        %v411 = vld [vmem:[%s182] sm:$0x3f]
        %v413 = vcombine.low %v411, %v411
        %v415 = vunpack.c.l.s4 1983009808
        %v416 = vunpack.c.0.s8 %v415
        %v417 = vlaneseq
        %v418 = vshrl.u32 %v417, 7
        %v419 = vsub.s32 %v416, %v418
        %v420 = vrot.slane %v413, %v419
        %v422 = vunpack.c.l.s4 1983009808
        %v423 = vunpack.c.0.s8 %v422
        %v424 = vlaneseq
        %v425 = vshrl.u32 %v424, 7
        %v426 = vsub.s32 %v423, %v425
        %v427 = vrot.slane %v411, %v426
        %428 = vrot.lane.b32.xlu0 %v420, 91
        %v429 = vpop.permute.xlu0 %428
        %430 = vrot.lane.b32.xlu0 %v427, 91
        %v431 = vpop.permute.xlu0 %430
        %v432 = vrot.slane %v429, 4
        %v433 = vrot.slane %v431, 4
        %v434 = vsel %vm252, %v432, %v433
        %vm435 = vcmask 744448
        %v436 = vsel %vm435, %v429, %v434
        %439 = vst [vmem:[#allocation2 + $0x24] sm:$0xcc] %v436
        %440 = vst.msk [vmem:[#allocation2 + $0x2c] sm:$0xc] %vm259, %v431
        %v441 = vld [vmem:[%s182] sm:$0x3f]
        %v443 = vcombine.high %v441, %v441
        %v445 = vunpack.c.l.s4 1983009808
        %v446 = vunpack.c.0.s8 %v445
        %v447 = vlaneseq
        %v448 = vshrl.u32 %v447, 7
        %v449 = vsub.s32 %v446, %v448
        %v450 = vrot.slane %v441, %v449
        %v452 = vunpack.c.l.s4 1983009808
        %v453 = vunpack.c.0.s8 %v452
        %v454 = vlaneseq
        %v455 = vshrl.u32 %v454, 7
        %v456 = vsub.s32 %v453, %v455
        %v457 = vrot.slane %v443, %v456
        %458 = vrot.lane.b32.xlu0 %v450, 90
        %v459 = vpop.permute.xlu0 %458
        %460 = vrot.lane.b32.xlu0 %v457, 90
        %v461 = vpop.permute.xlu0 %460
        %v462 = vrot.slane %v459, 4
        %v463 = vrot.slane %v461, 4
        %v464 = vsel %vm252, %v462, %v463
        %vm465 = vcmask 736256
        %v466 = vsel %vm465, %v459, %v464
        %469 = vst [vmem:[#allocation2 + $0x30] sm:$0x33] %v466
        %470 = vst.msk [vmem:[#allocation2 + $0x38] sm:$0x3] %vm227, %v461
        %v471 = vld [vmem:[%s1] sm:$0xf]
        %v472 = vld [vmem:[%s1 + $0x4] sm:$0xf]
        %v473 = vld [vmem:[#allocation2] sm:$0xff]
        %v474 = vld [vmem:[#allocation2 + $0x8] sm:$0xf]
        %v475 = vld [vmem:[#allocation2 + $0xc] sm:$0xff]
        %v476 = vld [vmem:[#allocation2 + $0x14] sm:$0xf]
        %v477 = vld [vmem:[#allocation2 + $0x18] sm:$0xff]
        %v478 = vld [vmem:[#allocation2 + $0x20] sm:$0xf]
        %v479 = vld [vmem:[#allocation2 + $0x24] sm:$0xff]
        %v480 = vld [vmem:[#allocation2 + $0x2c] sm:$0xf]
        %v481 = vld [vmem:[#allocation2 + $0x30] sm:$0x33]
        %v482 = vld [vmem:[#allocation2 + $0x38] sm:$0x3]
        %v485 = vunpack.c.l.b16 %v471
        %v486 = vunpack.c.l.b16 %v472
        %v487 = vpack.c.b16 %v486, %v485
        %v498 = vunpack.c.l.b16 %v473
        %v499 = vunpack.c.h.b16 %v473
        %v500 = vunpack.c.l.b16 %v474
        %v501 = vunpack.c.l.b16 %v475
        %v502 = vunpack.c.h.b16 %v475
        %v503 = vunpack.c.l.b16 %v476
        %v504 = vunpack.c.l.b16 %v477
        %v505 = vunpack.c.h.b16 %v477
        %v506 = vunpack.c.l.b16 %v478
        %v507 = vunpack.c.l.b16 %v479
        %v508 = vunpack.c.h.b16 %v479
        %v509 = vunpack.c.l.b16 %v480
        %v510 = vunpack.c.l.b16 %v481
        %v511 = vunpack.c.h.b16 %v481
        %v512 = vunpack.c.l.b16 %v482
        %v513 = vpack.c.b16 %v501, %v498
        %v514 = vpack.c.b16 %v502, %v499
        %v515 = vpack.c.b16 %v503, %v500
        %v516 = vpack.c.b16 %v507, %v504
        %v517 = vpack.c.b16 %v508, %v505
        %v518 = vpack.c.b16 %v509, %v506
        %v519 = vpack.c.b16 %v510, %v510
        %v520 = vpack.c.b16 %v511, %v511
        %v521 = vpack.c.b16 %v512, %v512
        %vm528 = vcmask 293888
        %v530 = vsel %vm528, %v487, 0
        %vm532 = vcmask 1041408
        %v534 = vsel %vm532, %v519, 0
        %v537 = vsel %vm532, %v520, 0
        %v540 = vsel %vm532, %v521, 0
        %542 = vmatprep.subr.bf16.mxu0 %v514
        %543 = vmatpush1.bf16.msra.mxu0 %v513
        %544 = vmatprep.subr.bf16.mxu0 %v517
        %545 = vmatpush1.bf16.msra.mxu0 %v516
        %546 = vmatprep.subr.bf16.mxu0 %v537
        %547 = vmatpush1.bf16.msra.mxu0 %v534
        %548 = vmatprep.subr.bf16.mxu0 0
        %549 = vmatpush1.bf16.msra.mxu0 0
        %550 = vmatprep.subr.bf16.mxu0 0
        %551 = vmatpush1.bf16.msra.mxu0 0
        %552 = vmatprep.subr.bf16.mxu0 0
        %553 = vmatpush1.bf16.msra.mxu0 0
        %554 = vmatprep.subr.bf16.mxu0 0
        %555 = vmatpush1.bf16.msra.mxu0 0
        %556 = vmatprep.subr.bf16.mxu0 0
        %557 = vmatpush1.bf16.msra.mxu0 0
        %558 = vmatprep.subr.bf16.mxu0 0
        %559 = vmatpush1.bf16.msra.mxu0 0
        %560 = vmatprep.subr.bf16.mxu0 0
        %561 = vmatpush1.bf16.msra.mxu0 0
        %562 = vmatprep.subr.bf16.mxu0 0
        %563 = vmatpush1.bf16.msra.mxu0 0
        %564 = vmatprep.subr.bf16.mxu0 0
        %565 = vmatpush1.bf16.msra.mxu0 0
        %566 = vmatprep.subr.bf16.mxu0 0
        %567 = vmatpush1.bf16.msra.mxu0 0
        %568 = vmatprep.subr.bf16.mxu0 0
        %569 = vmatpush1.bf16.msra.mxu0 0
        %570 = vmatprep.subr.bf16.mxu0 0
        %571 = vmatpush1.bf16.msra.mxu0 0
        %572 = vmatprep.subr.bf16.mxu0 0
        %573 = vmatpush1.bf16.msra.mxu0 0
        %574 = vmatprep.mubr.bf16.mxu0 0
        %575 = vmatmul.mubr.bf16.gmra.mrb[0].mxu0 %v530
        %v576 = vpop.f32.mrb[0].mxu0
        %v577 = vadd.f32 0.0, %v576
        %v578 = vpop.f32.mrb[0].mxu0
        %v579 = vadd.f32 0.0, %v578
        %v580 = vpop.f32.mrb[0].mxu0
        %v581 = vadd.f32 0.0, %v580
        %v582 = vpop.f32.mrb[0].mxu0
        %v583 = vadd.f32 0.0, %v582
        %584 = vdwg.mxu0
        %585 = vmatprep.subr.bf16.mxu0 0
        %586 = vmatpush1.bf16.msra.mxu0 %v515
        %587 = vmatprep.subr.bf16.mxu0 0
        %588 = vmatpush1.bf16.msra.mxu0 %v518
        %589 = vmatprep.subr.bf16.mxu0 0
        %590 = vmatpush1.bf16.msra.mxu0 %v540
        %591 = vmatprep.subr.bf16.mxu0 0
        %592 = vmatpush1.bf16.msra.mxu0 0
        %593 = vmatprep.subr.bf16.mxu0 0
        %594 = vmatpush1.bf16.msra.mxu0 0
        %595 = vmatprep.subr.bf16.mxu0 0
        %596 = vmatpush1.bf16.msra.mxu0 0
        %597 = vmatprep.subr.bf16.mxu0 0
        %598 = vmatpush1.bf16.msra.mxu0 0
        %599 = vmatprep.subr.bf16.mxu0 0
        %600 = vmatpush1.bf16.msra.mxu0 0
        %601 = vmatprep.subr.bf16.mxu0 0
        %602 = vmatpush1.bf16.msra.mxu0 0
        %603 = vmatprep.subr.bf16.mxu0 0
        %604 = vmatpush1.bf16.msra.mxu0 0
        %605 = vmatprep.subr.bf16.mxu0 0
        %606 = vmatpush1.bf16.msra.mxu0 0
        %607 = vmatprep.subr.bf16.mxu0 0
        %608 = vmatpush1.bf16.msra.mxu0 0
        %609 = vmatprep.subr.bf16.mxu0 0
        %610 = vmatpush1.bf16.msra.mxu0 0
        %611 = vmatprep.subr.bf16.mxu0 0
        %612 = vmatpush1.bf16.msra.mxu0 0
        %613 = vmatprep.subr.bf16.mxu0 0
        %614 = vmatpush1.bf16.msra.mxu0 0
        %615 = vmatprep.subr.bf16.mxu0 0
        %616 = vmatpush1.bf16.msra.mxu0 0
        %617 = vmatprep.mubr.bf16.mxu0 0
        %618 = vmatmul.mubr.bf16.gmra.mrb[0].mxu0 %v530
        %v619 = vpop.f32.mrb[0].mxu0
        %v620 = vadd.f32 0.0, %v619
        %v621 = vpop.f32.mrb[0].mxu0
        %v622 = vpop.f32.mrb[0].mxu0
        %v623 = vadd.f32 0.0, %v622
        %v624 = vpop.f32.mrb[0].mxu0
        %625 = vdwg.mxu0
        %vm626 = vcmp.gt.f32.partialorder %v577, 0.0
        %vm627 = vcmp.gt.f32.partialorder %v579, 0.0
        %vm628 = vcmp.gt.f32.partialorder %v620, 0.0
        %vm629 = vcmp.gt.f32.partialorder %v581, 0.0
        %vm630 = vcmp.gt.f32.partialorder %v583, 0.0
        %vm631 = vcmp.gt.f32.partialorder %v623, 0.0
        %vm632 = vmxor %vm626, %vm629
        %vm633 = vmxor %vm627, %vm630
        %vm634 = vmxor %vm628, %vm631
        %vm635 = vmxor %vm632, 1
        %vm636 = vmxor %vm633, 1
        %vm637 = vmxor %vm634, 1
        %v638 = vsel %vm626, 1.0, -1.0
        %v639 = vsel %vm627, 1.0, -1.0
        %v640 = vsel %vm628, 1.0, -1.0
        %v641 = vsel %vm629, 1.0, -1.0
        %v642 = vsel %vm630, 1.0, -1.0
        %v643 = vsel %vm631, 1.0, -1.0
        %v644 = vmul.f32 %v638, %v641
        %v645 = vmul.f32 %v639, %v642
        %v646 = vmul.f32 %v640, %v643
        %v647 = vsel %vm635, %v581, %v577
        %v648 = vsel %vm636, %v583, %v579
        %v649 = vsel %vm637, %v623, %v620
        %v650 = vsel %vm635, %v577, %v581
        %v651 = vsel %vm636, %v579, %v583
        %v652 = vsel %vm637, %v620, %v623
        %v653 = vadd.f32 %v650, 1e-05
        %v654 = vadd.f32 %v651, 1e-05
        %v655 = vadd.f32 %v652, 1e-05
        %v656 = vmul.f32 %v644, %v647
        %v657 = vmul.f32 %v645, %v648
        %v658 = vmul.f32 %v646, %v649
        %v659 = vrcp.pop %v653
        %v660 = vrcp.pop %v654
        %v661 = vrcp.pop %v655
        %v662 = vmul.f32 %v656, %v659
        %v663 = vmul.f32 %v657, %v660
        %v664 = vmul.f32 %v658, %v661
        %vm665 = vcmp.lt.f32.partialorder %v662, 0.0
        %vm666 = vcmp.lt.f32.partialorder %v663, 0.0
        %vm667 = vcmp.lt.f32.partialorder %v664, 0.0
        %v668 = vsel %vm665, -1.0, 1.0
        %v669 = vsel %vm666, -1.0, 1.0
        %v670 = vsel %vm667, -1.0, 1.0
        %v671 = vand.u32 2147483647, %v662
        %v672 = vand.u32 2147483647, %v663
        %v673 = vand.u32 2147483647, %v664
        %vm674 = vcmp.gt.f32.partialorder %v671, 2.4142137
        %vm675 = vcmp.gt.f32.partialorder %v672, 2.4142137
        %vm676 = vcmp.gt.f32.partialorder %v673, 2.4142137
        %vm677 = vcmp.gt.f32.partialorder %v671, 0.41421357
        %vm678 = vcmp.gt.f32.partialorder %v672, 0.41421357
        %vm679 = vcmp.gt.f32.partialorder %v673, 0.41421357
        %vm680 = vmxor %vm674, 1
        %vm681 = vmxor %vm675, 1
        %vm682 = vmxor %vm676, 1
        %vm683 = vmand %vm677, %vm680
        %vm684 = vmand %vm678, %vm681
        %vm685 = vmand %vm679, %vm682
        %v686 = vsel %vm683, 0.7853982, 0.0
        %v687 = vsel %vm684, 0.7853982, 0.0
        %v688 = vsel %vm685, 0.7853982, 0.0
        %v689 = vsel %vm674, 1.5707964, %v686
        %v690 = vsel %vm675, 1.5707964, %v687
        %v691 = vsel %vm676, 1.5707964, %v688
        %v692 = vsub.f32 %v671, 1.0
        %v693 = vsub.f32 %v672, 1.0
        %v694 = vsub.f32 %v673, 1.0
        %v695 = vsel %vm683, %v692, %v671
        %v696 = vsel %vm684, %v693, %v672
        %v697 = vsel %vm685, %v694, %v673
        %v698 = vsel %vm674, -1.0, %v695
        %v699 = vsel %vm675, -1.0, %v696
        %v700 = vsel %vm676, -1.0, %v697
        %v701 = vadd.f32 %v671, 1.0
        %v702 = vadd.f32 %v672, 1.0
        %v703 = vadd.f32 %v673, 1.0
        %v704 = vsel %vm683, %v701, 1.0
        %v705 = vsel %vm684, %v702, 1.0
        %v706 = vsel %vm685, %v703, 1.0
        %v707 = vsel %vm674, %v671, %v704
        %v708 = vsel %vm675, %v672, %v705
        %v709 = vsel %vm676, %v673, %v706
        %v710 = vrcp.pop %v707
        %v711 = vrcp.pop %v708
        %v712 = vrcp.pop %v709
        %v713 = vmul.f32 %v698, %v710
        %v714 = vmul.f32 %v699, %v711
        %v715 = vmul.f32 %v700, %v712
        %v716 = vmul.f32 %v713, %v713
        %v717 = vmul.f32 %v714, %v714
        %v718 = vmul.f32 %v715, %v715
        %v719 = vmul.f32 %v716, 0.080537446
        %v720 = vmul.f32 %v717, 0.080537446
        %v721 = vmul.f32 %v718, 0.080537446
        %v722 = vsub.f32 %v719, 0.13877685
        %v723 = vsub.f32 %v720, 0.13877685
        %v724 = vsub.f32 %v721, 0.13877685
        %v725 = vmul.f32 %v722, %v716
        %v726 = vmul.f32 %v723, %v717
        %v727 = vmul.f32 %v724, %v718
        %v728 = vadd.f32 %v725, 0.19977711
        %v729 = vadd.f32 %v726, 0.19977711
        %v730 = vadd.f32 %v727, 0.19977711
        %v731 = vmul.f32 %v728, %v716
        %v732 = vmul.f32 %v729, %v717
        %v733 = vmul.f32 %v730, %v718
        %v734 = vsub.f32 %v731, 0.3333295
        %v735 = vsub.f32 %v732, 0.3333295
        %v736 = vsub.f32 %v733, 0.3333295
        %v737 = vmul.f32 %v734, %v716
        %v738 = vmul.f32 %v735, %v717
        %v739 = vmul.f32 %v736, %v718
        %v740 = vmul.f32 %v737, %v713
        %v741 = vmul.f32 %v738, %v714
        %v742 = vmul.f32 %v739, %v715
        %v743 = vadd.f32 %v740, %v713
        %v744 = vadd.f32 %v741, %v714
        %v745 = vadd.f32 %v742, %v715
        %v746 = vadd.f32 %v689, %v743
        %v747 = vadd.f32 %v690, %v744
        %v748 = vadd.f32 %v691, %v745
        %v749 = vmul.f32 %v668, %v746
        %v750 = vmul.f32 %v669, %v747
        %v751 = vmul.f32 %v670, %v748
        %v752 = vmul.f32 %v662, %v662
        %v753 = vmul.f32 %v663, %v663
        %v754 = vmul.f32 %v664, %v664
        %v755 = vadd.f32 %v752, 1.0
        %v756 = vadd.f32 %v753, 1.0
        %v757 = vadd.f32 %v754, 1.0
        %v758 = vrsqrt.pop %v755
        %v759 = vrsqrt.pop %v756
        %v760 = vrsqrt.pop %v757
        %v761 = vmul.f32 %v662, %v758
        %v762 = vmul.f32 %v663, %v759
        %v763 = vmul.f32 %v664, %v760
        %v764 = vadd.f32 %v638, %v641
        %v765 = vadd.f32 %v639, %v642
        %v766 = vadd.f32 %v640, %v643
        %v767 = vmul.f32 %v764, 0.5
        %v768 = vmul.f32 %v765, 0.5
        %v769 = vmul.f32 %v766, 0.5
        %v770 = vsub.f32 %v641, %v638
        %v771 = vsub.f32 %v642, %v639
        %v772 = vsub.f32 %v643, %v640
        %v773 = vmul.f32 %v770, 0.5
        %v774 = vmul.f32 %v771, 0.5
        %v775 = vmul.f32 %v772, 0.5
        %v776 = vmul.f32 %v641, 1.5707964
        %v777 = vmul.f32 %v642, 1.5707964
        %v778 = vmul.f32 %v643, 1.5707964
        %v779 = vsub.f32 %v644, 1.0
        %v780 = vsub.f32 %v645, 1.0
        %v781 = vsub.f32 %v646, 1.0
        %v782 = vmul.f32 %v779, 0.7853982
        %v783 = vmul.f32 %v780, 0.7853982
        %v784 = vmul.f32 %v781, 0.7853982
        %v785 = vadd.f32 %v776, %v782
        %v786 = vadd.f32 %v777, %v783
        %v787 = vadd.f32 %v778, %v784
        %v788 = vmul.f32 %v767, %v758
        %v789 = vmul.f32 %v768, %v759
        %v790 = vmul.f32 %v769, %v760
        %v791 = vmul.f32 %v773, %v761
        %v792 = vmul.f32 %v774, %v762
        %v793 = vmul.f32 %v775, %v763
        %v794 = vsub.f32 %v788, %v791
        %v795 = vsub.f32 %v789, %v792
        %v796 = vsub.f32 %v790, %v793
        %v797 = vmul.f32 %v773, %v758
        %v798 = vmul.f32 %v774, %v759
        %v799 = vmul.f32 %v775, %v760
        %v800 = vmul.f32 %v767, %v761
        %v801 = vmul.f32 %v768, %v762
        %v802 = vmul.f32 %v769, %v763
        %v803 = vadd.f32 %v797, %v800
        %v804 = vadd.f32 %v798, %v801
        %v805 = vadd.f32 %v799, %v802
        %v806 = vmul.f32 %v794, %v577
        %v807 = vmul.f32 %v795, %v579
        %v808 = vmul.f32 %v796, %v620
        %v809 = vmul.f32 %v803, %v581
        %v810 = vmul.f32 %v804, %v583
        %v811 = vmul.f32 %v805, %v623
        %v812 = vadd.f32 %v806, %v809
        %v813 = vadd.f32 %v807, %v810
        %v814 = vadd.f32 %v808, %v811
        %v815 = vld [vmem:[%s2] sm:$0xff]
        %817 = vset.pattern.permute.xlu0 0
        %818 = vperm.xlu0 %817, %v815
        %v819 = vpop.permute.xlu0 %818
        %v821 = vadd.f32 %v812, %v819
        %v822 = vadd.f32 %v813, %v819
        %v823 = vadd.f32 %v814, %v819
        %824 = vst [vmem:[%s204] sm:$0xff] %v821
        %825 = vst [vmem:[%s204 + $0x8] sm:$0xff] %v822
        %vm826 = vcmask 261120
        %827 = vst.msk [vmem:[%s204 + $0x10] sm:$0xff] %vm826, %v823
        %v828 = vsub.f32 %v785, %v749
        %v829 = vsub.f32 %v786, %v750
        %v830 = vsub.f32 %v787, %v751
        %v831 = vmul.f32 %v828, 0.31830987
        %v832 = vmul.f32 %v829, 0.31830987
        %v833 = vmul.f32 %v830, 0.31830987
        %834 = vst [vmem:[%s204 + $0x18] sm:$0xff] %v831
        %835 = vst [vmem:[%s204 + $0x20] sm:$0xff] %v832
        %836 = vst.msk [vmem:[%s204 + $0x28] sm:$0xff] %vm826, %v833
        %s837 = sand.u32 %s112, 1
        %s838 = scalar_lea.sflag [#allocation5], %s837
        %s839 = sand.u32 %s112, 1
        %s840 = smul.addr %s839, 48
        %s841 = scalar_lea.vmem [#allocation6], %s840
        // Predicated region
        $region37: #{tpu_custom_call.1} parent=31 // pred_check
          %p842 = pneg %p122
        $region38: #{tpu_custom_call.1} parent=31 // pred_check_branch
          %844 = sbr.rel (%p842) target = $region40
        $region39: #{tpu_custom_call.1} parent=31 // pred_region
          %s845 = smul.u32 3, %s25
          %s847 = ssub.s32 768, 768
          %848 = vsyncadd %s838, %s847
          %s849 = smul.addr %s24, 6
          %s850 = sadd.s32 %s845, %s849
          %s851 = smul.addr %s850, 128
          %s852 = scalar_lea.hbm %s3, %s851
          %s853 = sshll.u32 %s841, 4
          %s854 = int_to_ptr.vmem [resolvable:$true] %s853
          %859 = dma.vmem_to_hbm [thread:$0]  %s854, 768, %s852, %s838, 384, 384, 24
        $region40: #{tpu_custom_call.1} parent=31 // pred_fallthru
          _
      $region32: #{tpu_custom_call.1} parent=5 // pred_fallthru
        _
      %p860 = scmp.le.s32.totalorder 2, %s15
      // Predicated region
      $region41: #{tpu_custom_call.1} parent=5 // pred_check
        %p861 = pneg %p860
      $region42: #{tpu_custom_call.1} parent=5 // pred_check_branch
        %863 = sbr.rel (%p861) target = $region44
      $region43: #{tpu_custom_call.1} parent=5 // pred_region
        %s864 = ssub.s32 %s15, 2
        // Predicated region
        $region45: #{tpu_custom_call.1} parent=43 // pred_check
          %p865 = pneg %p128
        $region46: #{tpu_custom_call.1} parent=43 // pred_check_branch
          %867 = sbr.rel (%p865) target = $region48
        $region47: #{tpu_custom_call.1} parent=43 // pred_region
          %s868 = sand.u32 %s113, 1
          %s869 = scalar_lea.sflag [#allocation5], %s868
          %s870 = sand.u32 %s113, 1
          %s871 = smul.addr %s870, 48
          %s872 = scalar_lea.vmem [#allocation6], %s871
          %873 = dma.done %s869, 768
        $region48: #{tpu_custom_call.1} parent=43 // pred_fallthru
          _
      $region44: #{tpu_custom_call.1} parent=5 // pred_fallthru
        _
    $region6: #{tpu_custom_call.1} parent=1 // loop_footer
      %s19 = sadd.s32 1, %s15
    $region7: #{tpu_custom_call.1} parent=1 // loop_footer_branch
      %14 = sbr.rel target = $region3
    $region8: #{tpu_custom_call.1} parent=1 // loop_exit
      _
    %874 = vsyncpa [#allocation4], 1
    %s875 = scalar_lea.sflag [#allocation4], 1
    %876 = vsyncpa %s875, 1
    %877 = vsyncpa [#allocation5], 1
    %s878 = scalar_lea.sflag [#allocation5], 1
    %879 = vsyncpa %s878, 1

</llo_original>
